<compile_context>
chip_gen: v6e
topology: v6e:2x2x1
jax: 0.10.0
libtpu: 0.0.40
codegen_flags: <defaults>
</compile_context>

<pallas_src>
import functools

import jax
import jax.numpy as jnp
from jax import lax
from jax.experimental import pallas as pl
from jax.experimental.pallas import tpu as pltpu


def _round_up(x, m):
    return ((x + m - 1) // m) * m


# -----------------------------------------------------------------------------
# Pallas kernel: conv-as-im2col matmul + folded BN shift + lane-chunked LIF loop
# -----------------------------------------------------------------------------
def _spiking_conv_lif_kernel(patches_ref, w_ref, shift_ref,
                             spikes_ref, rates_ref,
                             *, tau_u, v_th, time_steps, chunk):
    """One (batch, voxel-tile) grid step.

    patches_ref: (K_pad, tile_n)     bf16  im2col'd input, voxels on lanes
    w_ref      : (C_pad, K_pad)      bf16  conv weights with BN scale folded in
    shift_ref  : (C_pad, 1)          f32   conv bias + eval-BN shift, folded
    spikes_ref : (T, C_pad, tile_n)  f32   0/1 spikes, final layout
    rates_ref  : (C_pad, tile_n)     f32   mean spike rate over T
    """
    w = w_ref[...]
    shift = shift_ref[...]
    tile_n = patches_ref.shape[-1]
    inv_t = 1.0 / time_steps

    # Lane-chunk the LIF recurrence so i_in / u / rate stay small in vregs even
    # when the DMA tile (tile_n) is large.  All offsets/sizes are static and
    # multiples of 128, so every load/store stays lane-dense (no vst.msk).
    for off in range(0, tile_n, chunk):
        cur = min(chunk, tile_n - off)
        sl = pl.ds(off, cur)
        # Conv as one MXU matmul (f32 accumulation) + folded bias/BN shift.
        i_in = jnp.dot(w, patches_ref[:, sl],
                       preferred_element_type=jnp.float32) + shift
        u = jnp.zeros_like(i_in)            # reset_neurons() -> membrane = 0
        rate = jnp.zeros_like(i_in)
        # time_steps is small & static -> unrolled (LLO scheduler visibility).
        # LIF math kept in f32 (no bf16 VPU on v5e).
        for t in range(time_steps):
            u = tau_u * u + i_in
            mask = u >= v_th
            s = mask.astype(jnp.float32)    # exact 0.0 / 1.0, reused twice
            u = jnp.where(mask, u - v_th, u)  # soft reset (no extra mul)
            spikes_ref[t, :, sl] = s
            rate = rate + s
        rates_ref[:, sl] = rate * inv_t


# -----------------------------------------------------------------------------
# Plain-JAX glue: bf16, pre-padded im2col for 3D conv (K on sublanes, vox lanes)
# -----------------------------------------------------------------------------
def _im2col_3d(x, k, stride, pad, K_pad, vox_pad):
    """x: [B, C, D, H, W] -> patches [B, K_pad, vox_pad] (same dtype as x).

    K is flattened in (C, kd, kh, kw) order == torch weight.reshape(C_out, -1).
    Built in the caller's dtype (bf16) and padded here so only a single,
    half-width patches array is ever materialized.
    """
    B, C, D, H, W = x.shape
    xp = jnp.pad(x, ((0, 0), (0, 0), (pad, pad), (pad, pad), (pad, pad)))
    Do = (D + 2 * pad - k) // stride + 1
    Ho = (H + 2 * pad - k) // stride + 1
    Wo = (W + 2 * pad - k) // stride + 1
    cols = []
    for kd in range(k):
        for kh in range(k):
            for kw in range(k):
                cols.append(xp[:, :,
                               kd:kd + Do * stride:stride,
                               kh:kh + Ho * stride:stride,
                               kw:kw + Wo * stride:stride])
    p = jnp.stack(cols, axis=2)                       # [B, C, k^3, Do, Ho, Wo]
    K = C * k * k * k
    vox = Do * Ho * Wo
    p = p.reshape(B, K, vox)                          # [B, K, vox]
    p = jnp.pad(p, ((0, 0), (0, K_pad - K), (0, vox_pad - vox)))
    return p, (Do, Ho, Wo)


def spiking_encoder_block(x, params, *, kernel_size=3, stride=2, tau_u=0.9,
                          v_th=1.0, time_window=10, max_tile_n=2048,
                          lif_chunk=512, bn_eps=1e-5):
    """Forward of SpikingEncoderBlock (residual=False, eval-mode BN).

    Args:
      x: [B, C_in, D, H, W] float32 (NCDHW, like PyTorch)
    Returns:
      spike_tensor: [B, T, C_out, D', H', W']  float32
      spike_rates : [B, C_out, D', H', W']     float32
    """
    w, b, gamma, beta, run_mean, run_var = (params[n] for n in
                                            ("w", "b", "gamma", "beta",
                                             "running_mean", "running_var"))
    B, C_in, D, H, W = x.shape
    C_out = w.shape[0]
    k = kernel_size
    pad = k // 2
    Do = (D + 2 * pad - k) // stride + 1
    Ho = (H + 2 * pad - k) // stride + 1
    Wo = (W + 2 * pad - k) // stride + 1
    vox = Do * Ho * Wo
    K = C_in * k * k * k
    T = time_window

    # Alignment: K on the sublane axis -> multiple of 8 (NOT 128); voxels on
    # the lane axis -> multiple of 128; C_out on sublanes -> multiple of 8.
    K_pad = _round_up(K, 8)
    C_pad = max(8, _round_up(C_out, 8))
    tile_n = min(max_tile_n, _round_up(vox, 128))
    assert tile_n % 128 == 0
    vox_pad = _round_up(vox, tile_n)

    # Fold conv bias + eval-mode BatchNorm into the weights / a single shift.
    scale = gamma / jnp.sqrt(run_var + bn_eps)                       # [C_out]
    w_fold = w.reshape(C_out, K) * scale[:, None]                    # [C_out, K]
    shift_fold = beta + (b - run_mean) * scale                       # [C_out]
    w_fold = jnp.pad(w_fold, ((0, C_pad - C_out),
                              (0, K_pad - K))).astype(jnp.bfloat16)
    shift_col = jnp.pad(shift_fold,
                        (0, C_pad - C_out)).reshape(C_pad, 1).astype(jnp.float32)

    # im2col built directly in bf16 and pre-padded (one pass, half the bytes).
    patches, _ = _im2col_3d(x.astype(jnp.bfloat16), k, stride, pad,
                            K_pad, vox_pad)                          # [B,K_pad,vox_pad]

    kernel = functools.partial(_spiking_conv_lif_kernel,
                               tau_u=tau_u, v_th=v_th, time_steps=T,
                               chunk=min(lif_chunk, tile_n))

    spikes, rates = pl.pallas_call(
        kernel,
        grid=(B, vox_pad // tile_n),
        in_specs=[
            # patches^T tile for this (batch, voxel-tile); batch dim squeezed.
            pl.BlockSpec((None, K_pad, tile_n), lambda bi, j: (bi, 0, j)),
            pl.BlockSpec((C_pad, K_pad), lambda bi, j: (0, 0)),      # folded W
            pl.BlockSpec((C_pad, 1), lambda bi, j: (0, 0)),          # folded shift
        ],
        out_specs=[
            pl.BlockSpec((None, T, C_pad, tile_n), lambda bi, j: (bi, 0, 0, j)),
            pl.BlockSpec((None, C_pad, tile_n), lambda bi, j: (bi, 0, j)),
        ],
        out_shape=[
            jax.ShapeDtypeStruct((B, T, C_pad, vox_pad), jnp.float32),  # spikes
            jax.ShapeDtypeStruct((B, C_pad, vox_pad), jnp.float32),     # rates
        ],
        compiler_params=pltpu.CompilerParams(
            dimension_semantics=("parallel", "parallel"),
            vmem_limit_bytes=32 * 1024 * 1024),
    )(patches, w_fold, shift_col)

    # Kernel already emits the final (B, T, C, vox) layout and dtype: slicing
    # the channel/voxel padding is a no-op when shapes are already aligned (as
    # in the demo) and the reshape is free.  NOTE: padded voxel columns see
    # i_in = shift and may hold junk spikes — never consume them unsliced.
    spike_tensor = spikes[:, :, :C_out, :vox].reshape(B, T, C_out, Do, Ho, Wo)
    spike_rates = rates[:, :C_out, :vox].reshape(B, C_out, Do, Ho, Wo)
    return spike_tensor, spike_rates


# -----------------------------------------------------------------------------
# Pure-JAX reference (lax conv) for verification
# -----------------------------------------------------------------------------
def _reference(x, params, *, kernel_size, stride, tau_u, v_th, time_window,
               bn_eps=1e-5, quantize_bf16=True):
    pad = kernel_size // 2
    scale = params["gamma"] / jnp.sqrt(params["running_var"] + bn_eps)
    w_fold = params["w"] * scale.reshape(-1, 1, 1, 1, 1)
    shift = params["beta"] + (params["b"] - params["running_mean"]) * scale
    if quantize_bf16:
        # Mirror the kernel's bf16 MXU feed (bf16xbf16 products are exact in
        # f32, so only summation order differs from the Pallas kernel).
        w_fold = w_fold.astype(jnp.bfloat16).astype(jnp.float32)
        x = x.astype(jnp.bfloat16).astype(jnp.float32)
    i_in = lax.conv_general_dilated(
        x, w_fold, window_strides=(stride,) * 3, padding=[(pad, pad)] * 3,
        dimension_numbers=("NCDHW", "OIDHW", "NCDHW"))
    i_in = i_in + shift.reshape(1, -1, 1, 1, 1)
    u = jnp.zeros_like(i_in)
    outs = []
    for _ in range(time_window):
        u = tau_u * u + i_in
        s = (u >= v_th).astype(jnp.float32)
        u = u - s * v_th
        outs.append(s)
    spike_tensor = jnp.stack(outs, axis=1)
    return spike_tensor, spike_tensor.mean(axis=1)


if __name__ == "__main__":
    key = jax.random.PRNGKey(0)
    k_x, k_w = jax.random.split(key)

    B, C_in, D, H, W = 2, 4, 16, 16, 16
    C_out, ksz, stride, T = 8, 3, 2, 8
    tau_u, v_th = 0.9, 1.0

    x = jax.random.normal(k_x, (B, C_in, D, H, W), jnp.float32)
    params = {
        "w": 0.1 * jax.random.normal(k_w, (C_out, C_in, ksz, ksz, ksz), jnp.float32),
        "b": jnp.linspace(-0.1, 0.1, C_out, dtype=jnp.float32),
        "gamma": jnp.linspace(0.8, 1.2, C_out, dtype=jnp.float32),
        "beta": jnp.linspace(-0.05, 0.05, C_out, dtype=jnp.float32),
        "running_mean": jnp.linspace(-0.02, 0.02, C_out, dtype=jnp.float32),
        "running_var": jnp.linspace(0.9, 1.1, C_out, dtype=jnp.float32),
    }

    # vox = 8^3 = 512 per batch -> tile_n = 512, grid = (2, 1): 2 even steps
    # (keeps both v7x TensorCores busy), <0.5 MiB VMEM per step.
    spike_tensor, spike_rates = spiking_encoder_block(
        x, params, kernel_size=ksz, stride=stride, tau_u=tau_u, v_th=v_th,
        time_window=T)
    jax.block_until_ready((spike_tensor, spike_rates))

    ref_t, ref_r = _reference(x, params, kernel_size=ksz, stride=stride,
                              tau_u=tau_u, v_th=v_th, time_window=T)

    Do = Ho = Wo = (D + 2 * (ksz // 2) - ksz) // stride + 1
    assert spike_tensor.shape == (B, T, C_out, Do, Ho, Wo), spike_tensor.shape
    assert spike_rates.shape == (B, C_out, Do, Ho, Wo), spike_rates.shape

    # Spikes are a hard threshold; allow a tiny flip budget for summation-order
    # differences between the MXU matmul and lax.conv (both f32-accumulated).
    spike_mismatch = float(jnp.mean(jnp.abs(spike_tensor - ref_t)))
    assert spike_mismatch < 1e-3, f"spike mismatch fraction {spike_mismatch}"
    assert float(jnp.max(jnp.abs(spike_rates - ref_r))) < 0.2, "spike_rates mismatch"
    # Internal consistency: kernel-computed rates == mean of kernel spikes.
    assert jnp.allclose(spike_rates, spike_tensor.mean(axis=1), atol=1e-6)

    print("KERNEL_OK")
</pallas_src>

<mosaic_0001>
module attributes {stable_mosaic.version = 11 : i64} {
  func.func @_spiking_conv_lif_kernel(%arg0: i32, %arg1: i32, %arg2: memref<1x112x512xbf16, #tpu.memory_space<vmem>>, %arg3: memref<8x112xbf16, #tpu.memory_space<vmem>>, %arg4: memref<8x1xf32, #tpu.memory_space<vmem>>, %arg5: memref<1x8x8x512xf32, #tpu.memory_space<vmem>>, %arg6: memref<1x8x512xf32, #tpu.memory_space<vmem>>) attributes {dimension_semantics = [#tpu.dimension_semantics<parallel>, #tpu.dimension_semantics<parallel>], iteration_bounds = array<i64: 2, 1>, scalar_prefetch = 0 : i64, scratch_operands = 0 : i64, tpu.core_type = #tpu.core_type<tc>, window_params = [{transform_indices = @transform_0, window_bounds = array<i64: 1, 112, 512>}, {pipeline_mode = #tpu.pipeline_mode<synchronous>, transform_indices = @transform_1, window_bounds = array<i64: 8, 112>}, {pipeline_mode = #tpu.pipeline_mode<synchronous>, transform_indices = @transform_2, window_bounds = array<i64: 8, 1>}, {transform_indices = @transform_3, window_bounds = array<i64: 1, 8, 8, 512>}, {transform_indices = @transform_4, window_bounds = array<i64: 1, 8, 512>}]} {
    %c0 = arith.constant 0 : index
    %c0_0 = arith.constant 0 : index
    %0 = vector.load %arg3[%c0, %c0_0] : memref<8x112xbf16, #tpu.memory_space<vmem>>, vector<8x112xbf16>
    %c0_1 = arith.constant 0 : index
    %c0_2 = arith.constant 0 : index
    %1 = vector.load %arg4[%c0_1, %c0_2] : memref<8x1xf32, #tpu.memory_space<vmem>>, vector<8x1xf32>
    %c0_3 = arith.constant 0 : index
    %c0_4 = arith.constant 0 : index
    %c0_5 = arith.constant 0 : index
    %2 = vector.load %arg2[%c0_3, %c0_4, %c0_5] : memref<1x112x512xbf16, #tpu.memory_space<vmem>>, vector<1x112x512xbf16>
    %3 = vector.shape_cast %2 : vector<1x112x512xbf16> to vector<112x512xbf16>
    %cst = arith.constant dense<0.000000e+00> : vector<8x512xf32>
    %4 = tpu.matmul %0, %3, %cst {dimension_numbers = #tpu.dot_dimension_numbers<[1], [0], [0], [1], [0, 0, 1, 1], [], []>} : vector<8x112xbf16>, vector<112x512xbf16>, vector<8x512xf32> -> vector<8x512xf32>
    %5 = vector.broadcast %1 : vector<8x1xf32> to vector<8x512xf32>
    %6 = arith.addf %4, %5 : vector<8x512xf32>
    %cst_6 = arith.constant 0.000000e+00 : f32
    %7 = vector.broadcast %cst_6 : f32 to vector<8x512xf32>
    %cst_7 = arith.constant 0.000000e+00 : f32
    %8 = vector.broadcast %cst_7 : f32 to vector<8x512xf32>
    %cst_8 = arith.constant 0.899999976 : f32
    %9 = vector.broadcast %cst_8 : f32 to vector<8x512xf32>
    %10 = arith.mulf %9, %7 : vector<8x512xf32>
    %11 = arith.addf %10, %6 : vector<8x512xf32>
    %cst_9 = arith.constant 1.000000e+00 : f32
    %12 = vector.broadcast %cst_9 : f32 to vector<8x512xf32>
    %13 = arith.cmpf oge, %11, %12 : vector<8x512xf32>
    %14 = arith.extui %13 : vector<8x512xi1> to vector<8x512xi32>
    %15 = arith.sitofp %14 : vector<8x512xi32> to vector<8x512xf32>
    %cst_10 = arith.constant 1.000000e+00 : f32
    %16 = vector.broadcast %cst_10 : f32 to vector<8x512xf32>
    %17 = arith.subf %11, %16 : vector<8x512xf32>
    %18 = arith.select %13, %17, %11 : vector<8x512xi1>, vector<8x512xf32>
    %c0_11 = arith.constant 0 : index
    %c0_12 = arith.constant 0 : index
    %c0_13 = arith.constant 0 : index
    %c0_14 = arith.constant 0 : index
    %19 = vector.load %arg5[%c0_11, %c0_12, %c0_13, %c0_14] : memref<1x8x8x512xf32, #tpu.memory_space<vmem>>, vector<1x1x8x512xf32>
    %20 = vector.shape_cast %19 : vector<1x1x8x512xf32> to vector<8x512xf32>
    %21 = vector.shape_cast %15 : vector<8x512xf32> to vector<1x1x8x512xf32>
    tpu.vector_store %arg5[%c0_11, %c0_12, %c0_13, %c0_14], %21 {strides = array<i32>} : memref<1x8x8x512xf32, #tpu.memory_space<vmem>>, vector<1x1x8x512xf32>,
    %22 = arith.addf %8, %15 : vector<8x512xf32>
    %cst_15 = arith.constant 0.899999976 : f32
    %23 = vector.broadcast %cst_15 : f32 to vector<8x512xf32>
    %24 = arith.mulf %23, %18 : vector<8x512xf32>
    %25 = arith.addf %24, %6 : vector<8x512xf32>
    %cst_16 = arith.constant 1.000000e+00 : f32
    %26 = vector.broadcast %cst_16 : f32 to vector<8x512xf32>
    %27 = arith.cmpf oge, %25, %26 : vector<8x512xf32>
    %28 = arith.extui %27 : vector<8x512xi1> to vector<8x512xi32>
    %29 = arith.sitofp %28 : vector<8x512xi32> to vector<8x512xf32>
    %cst_17 = arith.constant 1.000000e+00 : f32
    %30 = vector.broadcast %cst_17 : f32 to vector<8x512xf32>
    %31 = arith.subf %25, %30 : vector<8x512xf32>
    %32 = arith.select %27, %31, %25 : vector<8x512xi1>, vector<8x512xf32>
    %c0_18 = arith.constant 0 : index
    %c1 = arith.constant 1 : index
    %c0_19 = arith.constant 0 : index
    %c0_20 = arith.constant 0 : index
    %33 = vector.load %arg5[%c0_18, %c1, %c0_19, %c0_20] : memref<1x8x8x512xf32, #tpu.memory_space<vmem>>, vector<1x1x8x512xf32>
    %34 = vector.shape_cast %33 : vector<1x1x8x512xf32> to vector<8x512xf32>
    %35 = vector.shape_cast %29 : vector<8x512xf32> to vector<1x1x8x512xf32>
    tpu.vector_store %arg5[%c0_18, %c1, %c0_19, %c0_20], %35 {strides = array<i32>} : memref<1x8x8x512xf32, #tpu.memory_space<vmem>>, vector<1x1x8x512xf32>,
    %36 = arith.addf %22, %29 : vector<8x512xf32>
    %cst_21 = arith.constant 0.899999976 : f32
    %37 = vector.broadcast %cst_21 : f32 to vector<8x512xf32>
    %38 = arith.mulf %37, %32 : vector<8x512xf32>
    %39 = arith.addf %38, %6 : vector<8x512xf32>
    %cst_22 = arith.constant 1.000000e+00 : f32
    %40 = vector.broadcast %cst_22 : f32 to vector<8x512xf32>
    %41 = arith.cmpf oge, %39, %40 : vector<8x512xf32>
    %42 = arith.extui %41 : vector<8x512xi1> to vector<8x512xi32>
    %43 = arith.sitofp %42 : vector<8x512xi32> to vector<8x512xf32>
    %cst_23 = arith.constant 1.000000e+00 : f32
    %44 = vector.broadcast %cst_23 : f32 to vector<8x512xf32>
    %45 = arith.subf %39, %44 : vector<8x512xf32>
    %46 = arith.select %41, %45, %39 : vector<8x512xi1>, vector<8x512xf32>
    %c0_24 = arith.constant 0 : index
    %c2 = arith.constant 2 : index
    %c0_25 = arith.constant 0 : index
    %c0_26 = arith.constant 0 : index
    %47 = vector.load %arg5[%c0_24, %c2, %c0_25, %c0_26] : memref<1x8x8x512xf32, #tpu.memory_space<vmem>>, vector<1x1x8x512xf32>
    %48 = vector.shape_cast %47 : vector<1x1x8x512xf32> to vector<8x512xf32>
    %49 = vector.shape_cast %43 : vector<8x512xf32> to vector<1x1x8x512xf32>
    tpu.vector_store %arg5[%c0_24, %c2, %c0_25, %c0_26], %49 {strides = array<i32>} : memref<1x8x8x512xf32, #tpu.memory_space<vmem>>, vector<1x1x8x512xf32>,
    %50 = arith.addf %36, %43 : vector<8x512xf32>
    %cst_27 = arith.constant 0.899999976 : f32
    %51 = vector.broadcast %cst_27 : f32 to vector<8x512xf32>
    %52 = arith.mulf %51, %46 : vector<8x512xf32>
    %53 = arith.addf %52, %6 : vector<8x512xf32>
    %cst_28 = arith.constant 1.000000e+00 : f32
    %54 = vector.broadcast %cst_28 : f32 to vector<8x512xf32>
    %55 = arith.cmpf oge, %53, %54 : vector<8x512xf32>
    %56 = arith.extui %55 : vector<8x512xi1> to vector<8x512xi32>
    %57 = arith.sitofp %56 : vector<8x512xi32> to vector<8x512xf32>
    %cst_29 = arith.constant 1.000000e+00 : f32
    %58 = vector.broadcast %cst_29 : f32 to vector<8x512xf32>
    %59 = arith.subf %53, %58 : vector<8x512xf32>
    %60 = arith.select %55, %59, %53 : vector<8x512xi1>, vector<8x512xf32>
    %c0_30 = arith.constant 0 : index
    %c3 = arith.constant 3 : index
    %c0_31 = arith.constant 0 : index
    %c0_32 = arith.constant 0 : index
    %61 = vector.load %arg5[%c0_30, %c3, %c0_31, %c0_32] : memref<1x8x8x512xf32, #tpu.memory_space<vmem>>, vector<1x1x8x512xf32>
    %62 = vector.shape_cast %61 : vector<1x1x8x512xf32> to vector<8x512xf32>
    %63 = vector.shape_cast %57 : vector<8x512xf32> to vector<1x1x8x512xf32>
    tpu.vector_store %arg5[%c0_30, %c3, %c0_31, %c0_32], %63 {strides = array<i32>} : memref<1x8x8x512xf32, #tpu.memory_space<vmem>>, vector<1x1x8x512xf32>,
    %64 = arith.addf %50, %57 : vector<8x512xf32>
    %cst_33 = arith.constant 0.899999976 : f32
    %65 = vector.broadcast %cst_33 : f32 to vector<8x512xf32>
    %66 = arith.mulf %65, %60 : vector<8x512xf32>
    %67 = arith.addf %66, %6 : vector<8x512xf32>
    %cst_34 = arith.constant 1.000000e+00 : f32
    %68 = vector.broadcast %cst_34 : f32 to vector<8x512xf32>
    %69 = arith.cmpf oge, %67, %68 : vector<8x512xf32>
    %70 = arith.extui %69 : vector<8x512xi1> to vector<8x512xi32>
    %71 = arith.sitofp %70 : vector<8x512xi32> to vector<8x512xf32>
    %cst_35 = arith.constant 1.000000e+00 : f32
    %72 = vector.broadcast %cst_35 : f32 to vector<8x512xf32>
    %73 = arith.subf %67, %72 : vector<8x512xf32>
    %74 = arith.select %69, %73, %67 : vector<8x512xi1>, vector<8x512xf32>
    %c0_36 = arith.constant 0 : index
    %c4 = arith.constant 4 : index
    %c0_37 = arith.constant 0 : index
    %c0_38 = arith.constant 0 : index
    %75 = vector.load %arg5[%c0_36, %c4, %c0_37, %c0_38] : memref<1x8x8x512xf32, #tpu.memory_space<vmem>>, vector<1x1x8x512xf32>
    %76 = vector.shape_cast %75 : vector<1x1x8x512xf32> to vector<8x512xf32>
    %77 = vector.shape_cast %71 : vector<8x512xf32> to vector<1x1x8x512xf32>
    tpu.vector_store %arg5[%c0_36, %c4, %c0_37, %c0_38], %77 {strides = array<i32>} : memref<1x8x8x512xf32, #tpu.memory_space<vmem>>, vector<1x1x8x512xf32>,
    %78 = arith.addf %64, %71 : vector<8x512xf32>
    %cst_39 = arith.constant 0.899999976 : f32
    %79 = vector.broadcast %cst_39 : f32 to vector<8x512xf32>
    %80 = arith.mulf %79, %74 : vector<8x512xf32>
    %81 = arith.addf %80, %6 : vector<8x512xf32>
    %cst_40 = arith.constant 1.000000e+00 : f32
    %82 = vector.broadcast %cst_40 : f32 to vector<8x512xf32>
    %83 = arith.cmpf oge, %81, %82 : vector<8x512xf32>
    %84 = arith.extui %83 : vector<8x512xi1> to vector<8x512xi32>
    %85 = arith.sitofp %84 : vector<8x512xi32> to vector<8x512xf32>
    %cst_41 = arith.constant 1.000000e+00 : f32
    %86 = vector.broadcast %cst_41 : f32 to vector<8x512xf32>
    %87 = arith.subf %81, %86 : vector<8x512xf32>
    %88 = arith.select %83, %87, %81 : vector<8x512xi1>, vector<8x512xf32>
    %c0_42 = arith.constant 0 : index
    %c5 = arith.constant 5 : index
    %c0_43 = arith.constant 0 : index
    %c0_44 = arith.constant 0 : index
    %89 = vector.load %arg5[%c0_42, %c5, %c0_43, %c0_44] : memref<1x8x8x512xf32, #tpu.memory_space<vmem>>, vector<1x1x8x512xf32>
    %90 = vector.shape_cast %89 : vector<1x1x8x512xf32> to vector<8x512xf32>
    %91 = vector.shape_cast %85 : vector<8x512xf32> to vector<1x1x8x512xf32>
    tpu.vector_store %arg5[%c0_42, %c5, %c0_43, %c0_44], %91 {strides = array<i32>} : memref<1x8x8x512xf32, #tpu.memory_space<vmem>>, vector<1x1x8x512xf32>,
    %92 = arith.addf %78, %85 : vector<8x512xf32>
    %cst_45 = arith.constant 0.899999976 : f32
    %93 = vector.broadcast %cst_45 : f32 to vector<8x512xf32>
    %94 = arith.mulf %93, %88 : vector<8x512xf32>
    %95 = arith.addf %94, %6 : vector<8x512xf32>
    %cst_46 = arith.constant 1.000000e+00 : f32
    %96 = vector.broadcast %cst_46 : f32 to vector<8x512xf32>
    %97 = arith.cmpf oge, %95, %96 : vector<8x512xf32>
    %98 = arith.extui %97 : vector<8x512xi1> to vector<8x512xi32>
    %99 = arith.sitofp %98 : vector<8x512xi32> to vector<8x512xf32>
    %cst_47 = arith.constant 1.000000e+00 : f32
    %100 = vector.broadcast %cst_47 : f32 to vector<8x512xf32>
    %101 = arith.subf %95, %100 : vector<8x512xf32>
    %102 = arith.select %97, %101, %95 : vector<8x512xi1>, vector<8x512xf32>
    %c0_48 = arith.constant 0 : index
    %c6 = arith.constant 6 : index
    %c0_49 = arith.constant 0 : index
    %c0_50 = arith.constant 0 : index
    %103 = vector.load %arg5[%c0_48, %c6, %c0_49, %c0_50] : memref<1x8x8x512xf32, #tpu.memory_space<vmem>>, vector<1x1x8x512xf32>
    %104 = vector.shape_cast %103 : vector<1x1x8x512xf32> to vector<8x512xf32>
    %105 = vector.shape_cast %99 : vector<8x512xf32> to vector<1x1x8x512xf32>
    tpu.vector_store %arg5[%c0_48, %c6, %c0_49, %c0_50], %105 {strides = array<i32>} : memref<1x8x8x512xf32, #tpu.memory_space<vmem>>, vector<1x1x8x512xf32>,
    %106 = arith.addf %92, %99 : vector<8x512xf32>
    %cst_51 = arith.constant 0.899999976 : f32
    %107 = vector.broadcast %cst_51 : f32 to vector<8x512xf32>
    %108 = arith.mulf %107, %102 : vector<8x512xf32>
    %109 = arith.addf %108, %6 : vector<8x512xf32>
    %cst_52 = arith.constant 1.000000e+00 : f32
    %110 = vector.broadcast %cst_52 : f32 to vector<8x512xf32>
    %111 = arith.cmpf oge, %109, %110 : vector<8x512xf32>
    %112 = arith.extui %111 : vector<8x512xi1> to vector<8x512xi32>
    %113 = arith.sitofp %112 : vector<8x512xi32> to vector<8x512xf32>
    %c0_53 = arith.constant 0 : index
    %c7 = arith.constant 7 : index
    %c0_54 = arith.constant 0 : index
    %c0_55 = arith.constant 0 : index
    %114 = vector.load %arg5[%c0_53, %c7, %c0_54, %c0_55] : memref<1x8x8x512xf32, #tpu.memory_space<vmem>>, vector<1x1x8x512xf32>
    %115 = vector.shape_cast %114 : vector<1x1x8x512xf32> to vector<8x512xf32>
    %116 = vector.shape_cast %113 : vector<8x512xf32> to vector<1x1x8x512xf32>
    tpu.vector_store %arg5[%c0_53, %c7, %c0_54, %c0_55], %116 {strides = array<i32>} : memref<1x8x8x512xf32, #tpu.memory_space<vmem>>, vector<1x1x8x512xf32>,
    %117 = arith.addf %106, %113 : vector<8x512xf32>
    %cst_56 = arith.constant 1.250000e-01 : f32
    %118 = vector.broadcast %cst_56 : f32 to vector<8x512xf32>
    %119 = arith.mulf %117, %118 : vector<8x512xf32>
    %c0_57 = arith.constant 0 : index
    %c0_58 = arith.constant 0 : index
    %c0_59 = arith.constant 0 : index
    %120 = vector.load %arg6[%c0_57, %c0_58, %c0_59] : memref<1x8x512xf32, #tpu.memory_space<vmem>>, vector<1x8x512xf32>
    %121 = vector.shape_cast %120 : vector<1x8x512xf32> to vector<8x512xf32>
    %122 = vector.shape_cast %119 : vector<8x512xf32> to vector<1x8x512xf32>
    tpu.vector_store %arg6[%c0_57, %c0_58, %c0_59], %122 {strides = array<i32>} : memref<1x8x512xf32, #tpu.memory_space<vmem>>, vector<1x8x512xf32>,
    return
  }
  func.func @transform_0(%arg0: i32, %arg1: i32) -> (i32, i32, i32) {
    %c0_i32 = arith.constant 0 : i32
    %c0_i32_0 = arith.constant 0 : i32
    return %arg0, %c0_i32, %arg1 : i32, i32, i32
  }
  func.func @transform_1(%arg0: i32, %arg1: i32) -> (i32, i32) {
    %c0_i32 = arith.constant 0 : i32
    %c0_i32_0 = arith.constant 0 : i32
    %c0_i32_1 = arith.constant 0 : i32
    return %c0_i32, %c0_i32_0 : i32, i32
  }
  func.func @transform_2(%arg0: i32, %arg1: i32) -> (i32, i32) {
    %c0_i32 = arith.constant 0 : i32
    %c0_i32_0 = arith.constant 0 : i32
    %c0_i32_1 = arith.constant 0 : i32
    return %c0_i32, %c0_i32_0 : i32, i32
  }
  func.func @transform_3(%arg0: i32, %arg1: i32) -> (i32, i32, i32, i32) {
    %c0_i32 = arith.constant 0 : i32
    %c0_i32_0 = arith.constant 0 : i32
    %c0_i32_1 = arith.constant 0 : i32
    return %arg0, %c0_i32, %c0_i32_0, %arg1 : i32, i32, i32, i32
  }
  func.func @transform_4(%arg0: i32, %arg1: i32) -> (i32, i32, i32) {
    %c0_i32 = arith.constant 0 : i32
    %c0_i32_0 = arith.constant 0 : i32
    return %arg0, %c0_i32, %arg1 : i32, i32, i32
  }
}

</mosaic_0001>

<llo_original>
// kernel: tpu_custom_call.1
$region0: #{tpu_custom_call.1}
  #allocation0 [shape = 'u32[]', space=smem, size = 0x4, offset = 0x4, fixed_abs, tag = 'smem constant byte address 0x4 - core index']
  #allocation1 [shape = 'u32[144,128]{1,0:T(1,128)}', space=vmem, size = 0x12000, scoped, tag = 'internal scratch']
  %s0 = inlined_call_operand.hbm [shape: bf16[2,112,512], index: 0, kind: input, shape index: {}]
  %s1 = inlined_call_operand.vmem [shape: bf16[8,112], index: 1, kind: input, shape index: {}]
  %s2 = inlined_call_operand.vmem [shape: f32[8,1], index: 2, kind: input, shape index: {}]
  %s3 = inlined_call_operand.hbm [shape: f32[2,8,8,512], index: 3, kind: output, shape index: {0}]
  %s4 = inlined_call_operand.hbm [shape: f32[2,8,512], index: 4, kind: output, shape index: {1}]
  %5 = xla_tuple %s3, %s4
  %s6 = sld [smem:[#allocation0]]
  $region57: #{tpu_custom_call.1} parent=0
    _
  %s8 = ssub.s32 1, %s6
  %s9 = scalar_select 0, %s8, %s6
  $region1: #{tpu_custom_call.1} parent=0
    #allocation2 [shape = 'u8[229376]{0}', space=vmem, size = 0x38000, scoped, tag = 'input window, operand 0']
    #allocation3 [shape = 's32[2]{0}', space=sflag, size = 0x8, scoped, tag = 'scoped memory for tpu_custom_call.1']
    #allocation4 [shape = 's32[2]{0}', space=sflag, size = 0x8, scoped, tag = 'scoped memory for tpu_custom_call.1']
    #allocation5 [shape = 'u8[262144]{0}', space=vmem, size = 0x40000, scoped, tag = 'output window, operand 0']
    #allocation6 [shape = 'u8[32768]{0}', space=vmem, size = 0x8000, scoped, tag = 'output window, operand 1']
    #allocation7 [shape = 's32[2]{0}', space=sflag, size = 0x8, scoped, tag = 'scoped memory for tpu_custom_call.1']
    %10 = vsyncpa [#allocation3], 0
    %s11 = scalar_lea.sflag [#allocation3], 1
    %12 = vsyncpa %s11, 0
    %13 = vsyncpa [#allocation4], 0
    %s14 = scalar_lea.sflag [#allocation4], 1
    %15 = vsyncpa %s14, 0
    %16 = vsyncpa [#allocation7], 0
    %s17 = scalar_lea.sflag [#allocation7], 1
    %18 = vsyncpa %s17, 0
    loop: start=0, step=1, limit=4
    $region2: #{tpu_custom_call.1} parent=1 // loop_pre_header
      _
    $region3: #{tpu_custom_call.1} parent=1 // loop_header
      %s20 = sphi 0, %s24
      %p21 = scmp.ge.s32.totalorder %s20, 4
      %s27 = sphi 0, %s39
      %s28 = sphi 0, %s35
      %s29 = sphi 0, %s27
      %s30 = sphi 0, %s28
      %s31 = sphi 0, %s29
      %s32 = sphi 0, %s30
      %s44 = sphi 0, %s46
      %s47 = sphi 0, %s44
      %s48 = sphi 0, %s47
      %s64 = sphi 0, %s48
      %s68 = sphi 0, %s68
      %s70 = sphi 0, %s68
      %s71 = sphi 0, %s70
      %s85 = sphi 0, %s71
      %s89 = sphi 0, %s89
      %s91 = sphi 0, %s89
      %s92 = sphi 0, %s91
      %s106 = sphi 0, %s92
      %s114 = sphi 0, %s116
      %s117 = sphi 0, %s114
      %s118 = sphi 0, %s117
      %s134 = sphi 0, %s118
      %s142 = sphi 0, %s144
      %s145 = sphi 0, %s142
      %s146 = sphi 0, %s145
      %s162 = sphi 0, %s146
    $region4: #{tpu_custom_call.1} parent=1 // loop_header_branch
      %23 = sbr.rel (%p21) target = $region8
    $region5: #{tpu_custom_call.1} parent=1 // loop_body
      %s25 = ssub.s32 %s20, 1
      %s26 = ssub.s32 %s20, 2
      %s33 = sadd.s32 1, %s28
      %p34 = scmp.ge.s32.totalorder %s33, 1
      %s35 = scalar_select %p34, 0, %s33
      %s36 = sadd.s32 1, %s27
      %s37 = scalar_select %p34, %s36, %s27
      %p38 = scmp.ge.s32.totalorder %s37, 2
      %s39 = scalar_select %p38, 0, %s37
      %s40 = ssub.s32 %s27, %s39
      %s41 = ssub.s32 %s28, %s35
      %s42 = sor.u32 %s40, %s41
      %p43 = scmp.eq.s32.totalorder %s42, 0
      %s45 = sadd.s32 %s44, 1
      %s46 = scalar_select %p43, %s44, %s45
      %p49 = pneg %p43
      %p50 = scmp.eq.s32.totalorder %s20, 1
      %p51 = por %p49, %p50
      %p52 = scmp.ne.s32.totalorder %s44, %s47
      %p53 = scmp.eq.s32.totalorder %s20, 0
      %p54 = por %p52, %p53
      %p55 = scmp.ne.s32.totalorder %s44, %s47
      %p56 = scmp.eq.s32.totalorder %s25, 1
      %p57 = por %p55, %p56
      %p58 = scmp.ne.s32.totalorder %s47, %s48
      %p59 = scmp.eq.s32.totalorder %s25, 0
      %p60 = por %p58, %p59
      %p61 = scmp.ne.s32.totalorder %s47, %s48
      %p62 = scmp.eq.s32.totalorder %s26, 1
      %p63 = por %p61, %p62
      %p65 = scmp.ne.s32.totalorder %s48, %s64
      %p66 = scmp.eq.s32.totalorder %s26, 0
      %p67 = por %p65, %p66
      %s69 = sadd.s32 %s68, 1
      %p72 = scmp.eq.s32.totalorder %s20, 1
      %p73 = scmp.ne.s32.totalorder %s68, %s70
      %p74 = scmp.eq.s32.totalorder %s20, 0
      %p75 = por %p73, %p74
      %p76 = scmp.ne.s32.totalorder %s68, %s70
      %p77 = scmp.eq.s32.totalorder %s25, 1
      %p78 = por %p76, %p77
      %p79 = scmp.ne.s32.totalorder %s70, %s71
      %p80 = scmp.eq.s32.totalorder %s25, 0
      %p81 = por %p79, %p80
      %p82 = scmp.ne.s32.totalorder %s70, %s71
      %p83 = scmp.eq.s32.totalorder %s26, 1
      %p84 = por %p82, %p83
      %p86 = scmp.ne.s32.totalorder %s71, %s85
      %p87 = scmp.eq.s32.totalorder %s26, 0
      %p88 = por %p86, %p87
      %s90 = sadd.s32 %s89, 1
      %p93 = scmp.eq.s32.totalorder %s20, 1
      %p94 = scmp.ne.s32.totalorder %s89, %s91
      %p95 = scmp.eq.s32.totalorder %s20, 0
      %p96 = por %p94, %p95
      %p97 = scmp.ne.s32.totalorder %s89, %s91
      %p98 = scmp.eq.s32.totalorder %s25, 1
      %p99 = por %p97, %p98
      %p100 = scmp.ne.s32.totalorder %s91, %s92
      %p101 = scmp.eq.s32.totalorder %s25, 0
      %p102 = por %p100, %p101
      %p103 = scmp.ne.s32.totalorder %s91, %s92
      %p104 = scmp.eq.s32.totalorder %s26, 1
      %p105 = por %p103, %p104
      %p107 = scmp.ne.s32.totalorder %s92, %s106
      %p108 = scmp.eq.s32.totalorder %s26, 0
      %p109 = por %p107, %p108
      %s110 = ssub.s32 %s27, %s39
      %s111 = ssub.s32 %s28, %s35
      %s112 = sor.u32 %s110, %s111
      %p113 = scmp.eq.s32.totalorder %s112, 0
      %s115 = sadd.s32 %s114, 1
      %s116 = scalar_select %p113, %s114, %s115
      %p119 = pneg %p113
      %p120 = scmp.eq.s32.totalorder %s20, 1
      %p121 = por %p119, %p120
      %p122 = scmp.ne.s32.totalorder %s114, %s117
      %p123 = scmp.eq.s32.totalorder %s20, 0
      %p124 = por %p122, %p123
      %p125 = scmp.ne.s32.totalorder %s114, %s117
      %p126 = scmp.eq.s32.totalorder %s25, 1
      %p127 = por %p125, %p126
      %p128 = scmp.ne.s32.totalorder %s117, %s118
      %p129 = scmp.eq.s32.totalorder %s25, 0
      %p130 = por %p128, %p129
      %p131 = scmp.ne.s32.totalorder %s117, %s118
      %p132 = scmp.eq.s32.totalorder %s26, 1
      %p133 = por %p131, %p132
      %p135 = scmp.ne.s32.totalorder %s118, %s134
      %p136 = scmp.eq.s32.totalorder %s26, 0
      %p137 = por %p135, %p136
      %s138 = ssub.s32 %s27, %s39
      %s139 = ssub.s32 %s28, %s35
      %s140 = sor.u32 %s138, %s139
      %p141 = scmp.eq.s32.totalorder %s140, 0
      %s143 = sadd.s32 %s142, 1
      %s144 = scalar_select %p141, %s142, %s143
      %p147 = pneg %p141
      %p148 = scmp.eq.s32.totalorder %s20, 1
      %p149 = por %p147, %p148
      %p150 = scmp.ne.s32.totalorder %s142, %s145
      %p151 = scmp.eq.s32.totalorder %s20, 0
      %p152 = por %p150, %p151
      %p153 = scmp.ne.s32.totalorder %s142, %s145
      %p154 = scmp.eq.s32.totalorder %s25, 1
      %p155 = por %p153, %p154
      %p156 = scmp.ne.s32.totalorder %s145, %s146
      %p157 = scmp.eq.s32.totalorder %s25, 0
      %p158 = por %p156, %p157
      %p159 = scmp.ne.s32.totalorder %s145, %s146
      %p160 = scmp.eq.s32.totalorder %s26, 1
      %p161 = por %p159, %p160
      %p163 = scmp.ne.s32.totalorder %s146, %s162
      %p164 = scmp.eq.s32.totalorder %s26, 0
      %p165 = por %p163, %p164
      %p166 = scmp.le.s32.totalorder 1, %s20
      %p167 = scmp.lt.s32.totalorder %s20, 3
      %p168 = pnand %p166, %p167
      %p169 = pneg %p168
      // Predicated region
      $region9: #{tpu_custom_call.1} parent=5 // pred_check
        _
      $region10: #{tpu_custom_call.1} parent=5 // pred_check_branch
        %171 = sbr.rel (%p168) target = $region12
      $region11: #{tpu_custom_call.1} parent=5 // pred_region
        %s172 = ssub.s32 %s20, 1
        // Predicated region
        $region13: #{tpu_custom_call.1} parent=11 // pred_check
          %p173 = pneg %p81
        $region14: #{tpu_custom_call.1} parent=11 // pred_check_branch
          %175 = sbr.rel (%p173) target = $region16
        $region15: #{tpu_custom_call.1} parent=11 // pred_region
          _
        $region16: #{tpu_custom_call.1} parent=11 // pred_fallthru
          _
        // Predicated region
        $region17: #{tpu_custom_call.1} parent=11 // pred_check
          %p176 = pneg %p102
        $region18: #{tpu_custom_call.1} parent=11 // pred_check_branch
          %178 = sbr.rel (%p176) target = $region20
        $region19: #{tpu_custom_call.1} parent=11 // pred_region
          _
        $region20: #{tpu_custom_call.1} parent=11 // pred_fallthru
          _
      $region12: #{tpu_custom_call.1} parent=5 // pred_fallthru
        _
      %p179 = scmp.lt.s32.totalorder %s20, 2
      // Predicated region
      $region21: #{tpu_custom_call.1} parent=5 // pred_check
        %p180 = pneg %p179
      $region22: #{tpu_custom_call.1} parent=5 // pred_check_branch
        %182 = sbr.rel (%p180) target = $region24
      $region23: #{tpu_custom_call.1} parent=5 // pred_region
        // Predicated region
        $region25: #{tpu_custom_call.1} parent=23 // pred_check
          %p183 = pneg %p54
        $region26: #{tpu_custom_call.1} parent=23 // pred_check_branch
          %185 = sbr.rel (%p183) target = $region28
        $region27: #{tpu_custom_call.1} parent=23 // pred_region
          %s186 = sand.u32 %s44, 1
          %s187 = scalar_lea.sflag [#allocation3], %s186
          %s188 = sand.u32 %s44, 1
          %s189 = smul.addr %s188, 224
          %s190 = scalar_lea.vmem [#allocation2], %s189
          %s191 = smul.u32 4, %s28
          %s193 = ssub.s32 3584, 3584
          %194 = vsyncadd %s187, %s193
          %s195 = smul.addr %s27, 56
          %s196 = sadd.s32 %s191, %s195
          %s197 = smul.addr %s196, 64
          %s198 = scalar_lea.hbm %s0, %s197
          %s199 = sshll.u32 %s190, 4
          %s200 = int_to_ptr.vmem [resolvable:$true] %s199
          %205 = dma.hbm_to_vmem [thread:$0]  %s198, 3584, %s200, %s187, 256, 256, 16
        $region28: #{tpu_custom_call.1} parent=23 // pred_fallthru
          _
      $region24: #{tpu_custom_call.1} parent=5 // pred_fallthru
        _
      %p206 = scmp.le.s32.totalorder 1, %s20
      %p207 = scmp.lt.s32.totalorder %s20, 3
      %p208 = pnand %p206, %p207
      %p209 = pneg %p208
      // Predicated region
      $region29: #{tpu_custom_call.1} parent=5 // pred_check
        _
      $region30: #{tpu_custom_call.1} parent=5 // pred_check_branch
        %211 = sbr.rel (%p208) target = $region32
      $region31: #{tpu_custom_call.1} parent=5 // pred_region
        %s212 = ssub.s32 %s20, 1
        %s213 = sand.u32 %s47, 1
        %s214 = scalar_lea.sflag [#allocation3], %s213
        %s215 = sand.u32 %s47, 1
        %s216 = smul.addr %s215, 224
        %s217 = scalar_lea.vmem [#allocation2], %s216
        // Predicated region
        $region33: #{tpu_custom_call.1} parent=31 // pred_check
          %p218 = pneg %p60
        $region34: #{tpu_custom_call.1} parent=31 // pred_check_branch
          %220 = sbr.rel (%p218) target = $region36
        $region35: #{tpu_custom_call.1} parent=31 // pred_region
          %221 = dma.done %s214, 3584
        $region36: #{tpu_custom_call.1} parent=31 // pred_fallthru
          _
        %s222 = sand.u32 %s47, 1
        %s223 = scalar_lea.sflag [#allocation3], %s222
        %s224 = sand.u32 %s47, 1
        %s225 = smul.addr %s224, 224
        %s226 = scalar_lea.vmem [#allocation2], %s225
        %p227 = pneg %p60
        %p228 = pneg %p57
        %p229 = pneg %p81
        %p230 = pneg %p78
        %p231 = pneg %p102
        %p232 = pneg %p99
        %p233 = pneg %p130
        %p234 = pneg %p127
        %s235 = sand.u32 %s117, 1
        %s236 = scalar_lea.sflag [#allocation4], %s235
        %s237 = sand.u32 %s117, 1
        %s238 = smul.addr %s237, 256
        %s239 = scalar_lea.vmem [#allocation5], %s238
        %p240 = pneg %p158
        %p241 = pneg %p155
        %s242 = sand.u32 %s145, 1
        %s243 = scalar_lea.sflag [#allocation7], %s242
        %s244 = sand.u32 %s145, 1
        %s245 = smul.addr %s244, 32
        %s246 = scalar_lea.vmem [#allocation6], %s245
        %s247 = smul.u32 4, %s30
        %s248 = smul.u32 4, %s30
        %s249 = smul.u32 4, %s30
        %v251 = vld [vmem:[%s1] sm:$0xf]
        %v252 = vld [vmem:[%s2] sm:$0xff]
        %v253 = vld [vmem:[%s217] sm:$0xff]
        %v254 = vld [vmem:[%s217 + $0x8] sm:$0xff]
        %v255 = vld [vmem:[%s217 + $0x10] sm:$0xff]
        %v256 = vld [vmem:[%s217 + $0x18] sm:$0xff]
        %v257 = vld [vmem:[%s217 + $0x20] sm:$0xff]
        %v258 = vld [vmem:[%s217 + $0x28] sm:$0xff]
        %v259 = vld [vmem:[%s217 + $0x30] sm:$0xff]
        %v260 = vld [vmem:[%s217 + $0x38] sm:$0xff]
        %v261 = vld [vmem:[%s217 + $0x40] sm:$0xff]
        %v262 = vld [vmem:[%s217 + $0x48] sm:$0xff]
        %v263 = vld [vmem:[%s217 + $0x50] sm:$0xff]
        %v264 = vld [vmem:[%s217 + $0x58] sm:$0xff]
        %v265 = vld [vmem:[%s217 + $0x60] sm:$0xff]
        %v266 = vld [vmem:[%s217 + $0x68] sm:$0xff]
        %v267 = vld [vmem:[%s217 + $0x70] sm:$0xff]
        %v268 = vld [vmem:[%s217 + $0x78] sm:$0xff]
        %v269 = vld [vmem:[%s217 + $0x80] sm:$0xff]
        %v270 = vld [vmem:[%s217 + $0x88] sm:$0xff]
        %v271 = vld [vmem:[%s217 + $0x90] sm:$0xff]
        %v272 = vld [vmem:[%s217 + $0x98] sm:$0xff]
        %v273 = vld [vmem:[%s217 + $0xa0] sm:$0xff]
        %v274 = vld [vmem:[%s217 + $0xa8] sm:$0xff]
        %v275 = vld [vmem:[%s217 + $0xb0] sm:$0xff]
        %v276 = vld [vmem:[%s217 + $0xb8] sm:$0xff]
        %v277 = vld [vmem:[%s217 + $0xc0] sm:$0xff]
        %v278 = vld [vmem:[%s217 + $0xc8] sm:$0xff]
        %v279 = vld [vmem:[%s217 + $0xd0] sm:$0xff]
        %v280 = vld [vmem:[%s217 + $0xd8] sm:$0xff]
        %282 = vset.pattern.permute.xlu0 0
        %283 = vperm.xlu0 %282, %v252
        %v284 = vpop.permute.xlu0 %283
        %v314 = vunpack.c.l.b16 %v253
        %v315 = vunpack.c.h.b16 %v253
        %v316 = vunpack.c.l.b16 %v254
        %v317 = vunpack.c.h.b16 %v254
        %v318 = vunpack.c.l.b16 %v255
        %v319 = vunpack.c.h.b16 %v255
        %v320 = vunpack.c.l.b16 %v256
        %v321 = vunpack.c.h.b16 %v256
        %v322 = vunpack.c.l.b16 %v257
        %v323 = vunpack.c.h.b16 %v257
        %v324 = vunpack.c.l.b16 %v258
        %v325 = vunpack.c.h.b16 %v258
        %v326 = vunpack.c.l.b16 %v259
        %v327 = vunpack.c.h.b16 %v259
        %v328 = vunpack.c.l.b16 %v260
        %v329 = vunpack.c.h.b16 %v260
        %v330 = vunpack.c.l.b16 %v261
        %v331 = vunpack.c.h.b16 %v261
        %v332 = vunpack.c.l.b16 %v262
        %v333 = vunpack.c.h.b16 %v262
        %v334 = vunpack.c.l.b16 %v263
        %v335 = vunpack.c.h.b16 %v263
        %v336 = vunpack.c.l.b16 %v264
        %v337 = vunpack.c.h.b16 %v264
        %v338 = vunpack.c.l.b16 %v265
        %v339 = vunpack.c.h.b16 %v265
        %v340 = vunpack.c.l.b16 %v266
        %v341 = vunpack.c.h.b16 %v266
        %v342 = vunpack.c.l.b16 %v267
        %v343 = vunpack.c.h.b16 %v267
        %v344 = vunpack.c.l.b16 %v268
        %v345 = vunpack.c.h.b16 %v268
        %v346 = vunpack.c.l.b16 %v269
        %v347 = vunpack.c.h.b16 %v269
        %v348 = vunpack.c.l.b16 %v270
        %v349 = vunpack.c.h.b16 %v270
        %v350 = vunpack.c.l.b16 %v271
        %v351 = vunpack.c.h.b16 %v271
        %v352 = vunpack.c.l.b16 %v272
        %v353 = vunpack.c.h.b16 %v272
        %v354 = vunpack.c.l.b16 %v273
        %v355 = vunpack.c.h.b16 %v273
        %v356 = vunpack.c.l.b16 %v274
        %v357 = vunpack.c.h.b16 %v274
        %v358 = vunpack.c.l.b16 %v275
        %v359 = vunpack.c.h.b16 %v275
        %v360 = vunpack.c.l.b16 %v276
        %v361 = vunpack.c.h.b16 %v276
        %v362 = vunpack.c.l.b16 %v277
        %v363 = vunpack.c.h.b16 %v277
        %v364 = vunpack.c.l.b16 %v278
        %v365 = vunpack.c.h.b16 %v278
        %v366 = vunpack.c.l.b16 %v279
        %v367 = vunpack.c.h.b16 %v279
        %v368 = vunpack.c.l.b16 %v280
        %v369 = vunpack.c.h.b16 %v280
        %v370 = vpack.c.b16 %v318, %v314
        %v371 = vpack.c.b16 %v319, %v315
        %v372 = vpack.c.b16 %v320, %v316
        %v373 = vpack.c.b16 %v321, %v317
        %v374 = vpack.c.b16 %v326, %v322
        %v375 = vpack.c.b16 %v327, %v323
        %v376 = vpack.c.b16 %v328, %v324
        %v377 = vpack.c.b16 %v329, %v325
        %v378 = vpack.c.b16 %v334, %v330
        %v379 = vpack.c.b16 %v335, %v331
        %v380 = vpack.c.b16 %v336, %v332
        %v381 = vpack.c.b16 %v337, %v333
        %v382 = vpack.c.b16 %v342, %v338
        %v383 = vpack.c.b16 %v343, %v339
        %v384 = vpack.c.b16 %v344, %v340
        %v385 = vpack.c.b16 %v345, %v341
        %v386 = vpack.c.b16 %v350, %v346
        %v387 = vpack.c.b16 %v351, %v347
        %v388 = vpack.c.b16 %v352, %v348
        %v389 = vpack.c.b16 %v353, %v349
        %v390 = vpack.c.b16 %v358, %v354
        %v391 = vpack.c.b16 %v359, %v355
        %v392 = vpack.c.b16 %v360, %v356
        %v393 = vpack.c.b16 %v361, %v357
        %v394 = vpack.c.b16 %v366, %v362
        %v395 = vpack.c.b16 %v367, %v363
        %v396 = vpack.c.b16 %v368, %v364
        %v397 = vpack.c.b16 %v369, %v365
        %vm426 = vcmask 916480
        %v428 = vsel %vm426, %v251, 0
        %430 = vmatprep.subr.bf16.mxu0 0
        %431 = vmatpush1.bf16.msra.mxu0 0
        %432 = vmatprep.subr.bf16.mxu0 %v395
        %433 = vmatpush1.bf16.msra.mxu0 %v394
        %434 = vmatprep.subr.bf16.mxu0 %v391
        %435 = vmatpush1.bf16.msra.mxu0 %v390
        %436 = vmatprep.subr.bf16.mxu0 %v387
        %437 = vmatpush1.bf16.msra.mxu0 %v386
        %438 = vmatprep.subr.bf16.mxu0 %v383
        %439 = vmatpush1.bf16.msra.mxu0 %v382
        %440 = vmatprep.subr.bf16.mxu0 %v379
        %441 = vmatpush1.bf16.msra.mxu0 %v378
        %442 = vmatprep.subr.bf16.mxu0 %v375
        %443 = vmatpush1.bf16.msra.mxu0 %v374
        %444 = vmatprep.subr.bf16.mxu0 %v371
        %445 = vmatpush1.bf16.msra.mxu0 %v370
        %446 = vmatprep.subr.bf16.mxu0 0
        %447 = vmatpush2.bf16.msra.mxu0 0
        %448 = vmatprep.subr.bf16.mxu0 0
        %449 = vmatpush2.bf16.msra.mxu0 0
        %450 = vmatprep.subr.bf16.mxu0 0
        %451 = vmatpush2.bf16.msra.mxu0 0
        %452 = vmatprep.subr.bf16.mxu0 0
        %453 = vmatpush2.bf16.msra.mxu0 0
        %454 = vmatprep.subr.bf16.mxu0 0
        %455 = vmatpush2.bf16.msra.mxu0 0
        %456 = vmatprep.subr.bf16.mxu0 0
        %457 = vmatpush2.bf16.msra.mxu0 0
        %458 = vmatprep.subr.bf16.mxu0 0
        %459 = vmatpush2.bf16.msra.mxu0 0
        %460 = vmatprep.subr.bf16.mxu0 0
        %461 = vmatpush2.bf16.msra.mxu0 0
        %462 = vmatprep.mubr.bf16.mxu0 0
        %463 = vmatmul.mubr.bf16.gmra.mxu0 %v428
        %v464 = vpop.f32.mrf.mxu0
        %v465 = vadd.f32 %v284, %v464
        %v466 = vpop.f32.mrf.mxu0
        %v467 = vadd.f32 %v284, %v466
        %v468 = vpop.f32.mrf.mxu0
        %v469 = vpop.f32.mrf.mxu0
        %470 = vdwg.mxu0
        %471 = vmatprep.subr.bf16.mxu0 0
        %472 = vmatpush1.bf16.msra.mxu0 0
        %473 = vmatprep.subr.bf16.mxu0 %v397
        %474 = vmatpush1.bf16.msra.mxu0 %v396
        %475 = vmatprep.subr.bf16.mxu0 %v393
        %476 = vmatpush1.bf16.msra.mxu0 %v392
        %477 = vmatprep.subr.bf16.mxu0 %v389
        %478 = vmatpush1.bf16.msra.mxu0 %v388
        %479 = vmatprep.subr.bf16.mxu0 %v385
        %480 = vmatpush1.bf16.msra.mxu0 %v384
        %481 = vmatprep.subr.bf16.mxu0 %v381
        %482 = vmatpush1.bf16.msra.mxu0 %v380
        %483 = vmatprep.subr.bf16.mxu0 %v377
        %484 = vmatpush1.bf16.msra.mxu0 %v376
        %485 = vmatprep.subr.bf16.mxu0 %v373
        %486 = vmatpush1.bf16.msra.mxu0 %v372
        %487 = vmatprep.subr.bf16.mxu0 0
        %488 = vmatpush2.bf16.msra.mxu0 0
        %489 = vmatprep.subr.bf16.mxu0 0
        %490 = vmatpush2.bf16.msra.mxu0 0
        %491 = vmatprep.subr.bf16.mxu0 0
        %492 = vmatpush2.bf16.msra.mxu0 0
        %493 = vmatprep.subr.bf16.mxu0 0
        %494 = vmatpush2.bf16.msra.mxu0 0
        %495 = vmatprep.subr.bf16.mxu0 0
        %496 = vmatpush2.bf16.msra.mxu0 0
        %497 = vmatprep.subr.bf16.mxu0 0
        %498 = vmatpush2.bf16.msra.mxu0 0
        %499 = vmatprep.subr.bf16.mxu0 0
        %500 = vmatpush2.bf16.msra.mxu0 0
        %501 = vmatprep.subr.bf16.mxu0 0
        %502 = vmatpush2.bf16.msra.mxu0 0
        %503 = vmatprep.mubr.bf16.mxu0 0
        %504 = vmatmul.mubr.bf16.gmra.mxu0 %v428
        %v505 = vpop.f32.mrf.mxu0
        %v506 = vadd.f32 %v284, %v505
        %v507 = vpop.f32.mrf.mxu0
        %v508 = vadd.f32 %v284, %v507
        %v509 = vpop.f32.mrf.mxu0
        %v510 = vpop.f32.mrf.mxu0
        %511 = vdwg.mxu0
        %v512 = vadd.f32 %v465, 0.0
        %v513 = vadd.f32 %v467, 0.0
        %v514 = vadd.f32 %v506, 0.0
        %v515 = vadd.f32 %v508, 0.0
        %vm516 = vcmp.ge.f32.partialorder %v512, 1.0
        %vm517 = vcmp.ge.f32.partialorder %v513, 1.0
        %vm518 = vcmp.ge.f32.partialorder %v514, 1.0
        %vm519 = vcmp.ge.f32.partialorder %v515, 1.0
        %v520 = vsel %vm516, 1, 0
        %v521 = vsel %vm517, 1, 0
        %v522 = vsel %vm518, 1, 0
        %v523 = vsel %vm519, 1, 0
        %v524 = vcvt.s32.f32 %v520
        %v525 = vcvt.s32.f32 %v521
        %v526 = vcvt.s32.f32 %v522
        %v527 = vcvt.s32.f32 %v523
        %v528 = vsub.f32 %v512, 1.0
        %v529 = vsub.f32 %v513, 1.0
        %v530 = vsub.f32 %v514, 1.0
        %v531 = vsub.f32 %v515, 1.0
        %v532 = vsel %vm516, %v528, %v512
        %v533 = vsel %vm517, %v529, %v513
        %v534 = vsel %vm518, %v530, %v514
        %v535 = vsel %vm519, %v531, %v515
        %536 = vst [vmem:[%s239] sm:$0xff] %v524
        %537 = vst [vmem:[%s239 + $0x8] sm:$0xff] %v525
        %538 = vst [vmem:[%s239 + $0x10] sm:$0xff] %v526
        %539 = vst [vmem:[%s239 + $0x18] sm:$0xff] %v527
        %v540 = vadd.f32 %v524, 0.0
        %v541 = vadd.f32 %v525, 0.0
        %v542 = vadd.f32 %v526, 0.0
        %v543 = vadd.f32 %v527, 0.0
        %v544 = vmul.f32 %v532, 0.9
        %v545 = vmul.f32 %v533, 0.9
        %v546 = vmul.f32 %v534, 0.9
        %v547 = vmul.f32 %v535, 0.9
        %v548 = vadd.f32 %v544, %v465
        %v549 = vadd.f32 %v545, %v467
        %v550 = vadd.f32 %v546, %v506
        %v551 = vadd.f32 %v547, %v508
        %vm552 = vcmp.ge.f32.partialorder %v548, 1.0
        %vm553 = vcmp.ge.f32.partialorder %v549, 1.0
        %vm554 = vcmp.ge.f32.partialorder %v550, 1.0
        %vm555 = vcmp.ge.f32.partialorder %v551, 1.0
        %v556 = vsel %vm552, 1, 0
        %v557 = vsel %vm553, 1, 0
        %v558 = vsel %vm554, 1, 0
        %v559 = vsel %vm555, 1, 0
        %v560 = vcvt.s32.f32 %v556
        %v561 = vcvt.s32.f32 %v557
        %v562 = vcvt.s32.f32 %v558
        %v563 = vcvt.s32.f32 %v559
        %v564 = vsub.f32 %v548, 1.0
        %v565 = vsub.f32 %v549, 1.0
        %v566 = vsub.f32 %v550, 1.0
        %v567 = vsub.f32 %v551, 1.0
        %v568 = vsel %vm552, %v564, %v548
        %v569 = vsel %vm553, %v565, %v549
        %v570 = vsel %vm554, %v566, %v550
        %v571 = vsel %vm555, %v567, %v551
        %s572 = scalar_lea.vmem %s239, 32 [#allocation5]
        %573 = vst [vmem:[%s572] sm:$0xff] %v560
        %574 = vst [vmem:[%s572 + $0x8] sm:$0xff] %v561
        %575 = vst [vmem:[%s572 + $0x10] sm:$0xff] %v562
        %576 = vst [vmem:[%s572 + $0x18] sm:$0xff] %v563
        %v577 = vadd.f32 %v540, %v560
        %v578 = vadd.f32 %v541, %v561
        %v579 = vadd.f32 %v542, %v562
        %v580 = vadd.f32 %v543, %v563
        %v581 = vmul.f32 %v568, 0.9
        %v582 = vmul.f32 %v569, 0.9
        %v583 = vmul.f32 %v570, 0.9
        %v584 = vmul.f32 %v571, 0.9
        %v585 = vadd.f32 %v581, %v465
        %v586 = vadd.f32 %v582, %v467
        %v587 = vadd.f32 %v583, %v506
        %v588 = vadd.f32 %v584, %v508
        %vm589 = vcmp.ge.f32.partialorder %v585, 1.0
        %vm590 = vcmp.ge.f32.partialorder %v586, 1.0
        %vm591 = vcmp.ge.f32.partialorder %v587, 1.0
        %vm592 = vcmp.ge.f32.partialorder %v588, 1.0
        %v593 = vsel %vm589, 1, 0
        %v594 = vsel %vm590, 1, 0
        %v595 = vsel %vm591, 1, 0
        %v596 = vsel %vm592, 1, 0
        %v597 = vcvt.s32.f32 %v593
        %v598 = vcvt.s32.f32 %v594
        %v599 = vcvt.s32.f32 %v595
        %v600 = vcvt.s32.f32 %v596
        %v601 = vsub.f32 %v585, 1.0
        %v602 = vsub.f32 %v586, 1.0
        %v603 = vsub.f32 %v587, 1.0
        %v604 = vsub.f32 %v588, 1.0
        %v605 = vsel %vm589, %v601, %v585
        %v606 = vsel %vm590, %v602, %v586
        %v607 = vsel %vm591, %v603, %v587
        %v608 = vsel %vm592, %v604, %v588
        %s609 = scalar_lea.vmem %s239, 64 [#allocation5]
        %610 = vst [vmem:[%s609] sm:$0xff] %v597
        %611 = vst [vmem:[%s609 + $0x8] sm:$0xff] %v598
        %612 = vst [vmem:[%s609 + $0x10] sm:$0xff] %v599
        %613 = vst [vmem:[%s609 + $0x18] sm:$0xff] %v600
        %v614 = vadd.f32 %v577, %v597
        %v615 = vadd.f32 %v578, %v598
        %v616 = vadd.f32 %v579, %v599
        %v617 = vadd.f32 %v580, %v600
        %v618 = vmul.f32 %v605, 0.9
        %v619 = vmul.f32 %v606, 0.9
        %v620 = vmul.f32 %v607, 0.9
        %v621 = vmul.f32 %v608, 0.9
        %v622 = vadd.f32 %v618, %v465
        %v623 = vadd.f32 %v619, %v467
        %v624 = vadd.f32 %v620, %v506
        %v625 = vadd.f32 %v621, %v508
        %vm626 = vcmp.ge.f32.partialorder %v622, 1.0
        %vm627 = vcmp.ge.f32.partialorder %v623, 1.0
        %vm628 = vcmp.ge.f32.partialorder %v624, 1.0
        %vm629 = vcmp.ge.f32.partialorder %v625, 1.0
        %v630 = vsel %vm626, 1, 0
        %v631 = vsel %vm627, 1, 0
        %v632 = vsel %vm628, 1, 0
        %v633 = vsel %vm629, 1, 0
        %v634 = vcvt.s32.f32 %v630
        %v635 = vcvt.s32.f32 %v631
        %v636 = vcvt.s32.f32 %v632
        %v637 = vcvt.s32.f32 %v633
        %v638 = vsub.f32 %v622, 1.0
        %v639 = vsub.f32 %v623, 1.0
        %v640 = vsub.f32 %v624, 1.0
        %v641 = vsub.f32 %v625, 1.0
        %v642 = vsel %vm626, %v638, %v622
        %v643 = vsel %vm627, %v639, %v623
        %v644 = vsel %vm628, %v640, %v624
        %v645 = vsel %vm629, %v641, %v625
        %s646 = scalar_lea.vmem %s239, 96 [#allocation5]
        %647 = vst [vmem:[%s646] sm:$0xff] %v634
        %648 = vst [vmem:[%s646 + $0x8] sm:$0xff] %v635
        %649 = vst [vmem:[%s646 + $0x10] sm:$0xff] %v636
        %650 = vst [vmem:[%s646 + $0x18] sm:$0xff] %v637
        %v651 = vadd.f32 %v614, %v634
        %v652 = vadd.f32 %v615, %v635
        %v653 = vadd.f32 %v616, %v636
        %v654 = vadd.f32 %v617, %v637
        %v655 = vmul.f32 %v642, 0.9
        %v656 = vmul.f32 %v643, 0.9
        %v657 = vmul.f32 %v644, 0.9
        %v658 = vmul.f32 %v645, 0.9
        %v659 = vadd.f32 %v655, %v465
        %v660 = vadd.f32 %v656, %v467
        %v661 = vadd.f32 %v657, %v506
        %v662 = vadd.f32 %v658, %v508
        %vm663 = vcmp.ge.f32.partialorder %v659, 1.0
        %vm664 = vcmp.ge.f32.partialorder %v660, 1.0
        %vm665 = vcmp.ge.f32.partialorder %v661, 1.0
        %vm666 = vcmp.ge.f32.partialorder %v662, 1.0
        %v667 = vsel %vm663, 1, 0
        %v668 = vsel %vm664, 1, 0
        %v669 = vsel %vm665, 1, 0
        %v670 = vsel %vm666, 1, 0
        %v671 = vcvt.s32.f32 %v667
        %v672 = vcvt.s32.f32 %v668
        %v673 = vcvt.s32.f32 %v669
        %v674 = vcvt.s32.f32 %v670
        %v675 = vsub.f32 %v659, 1.0
        %v676 = vsub.f32 %v660, 1.0
        %v677 = vsub.f32 %v661, 1.0
        %v678 = vsub.f32 %v662, 1.0
        %v679 = vsel %vm663, %v675, %v659
        %v680 = vsel %vm664, %v676, %v660
        %v681 = vsel %vm665, %v677, %v661
        %v682 = vsel %vm666, %v678, %v662
        %s683 = scalar_lea.vmem %s239, 128 [#allocation5]
        %684 = vst [vmem:[%s683] sm:$0xff] %v671
        %685 = vst [vmem:[%s683 + $0x8] sm:$0xff] %v672
        %686 = vst [vmem:[%s683 + $0x10] sm:$0xff] %v673
        %687 = vst [vmem:[%s683 + $0x18] sm:$0xff] %v674
        %v688 = vadd.f32 %v651, %v671
        %v689 = vadd.f32 %v652, %v672
        %v690 = vadd.f32 %v653, %v673
        %v691 = vadd.f32 %v654, %v674
        %v692 = vmul.f32 %v679, 0.9
        %v693 = vmul.f32 %v680, 0.9
        %v694 = vmul.f32 %v681, 0.9
        %v695 = vmul.f32 %v682, 0.9
        %v696 = vadd.f32 %v692, %v465
        %v697 = vadd.f32 %v693, %v467
        %v698 = vadd.f32 %v694, %v506
        %v699 = vadd.f32 %v695, %v508
        %vm700 = vcmp.ge.f32.partialorder %v696, 1.0
        %vm701 = vcmp.ge.f32.partialorder %v697, 1.0
        %vm702 = vcmp.ge.f32.partialorder %v698, 1.0
        %vm703 = vcmp.ge.f32.partialorder %v699, 1.0
        %v704 = vsel %vm700, 1, 0
        %v705 = vsel %vm701, 1, 0
        %v706 = vsel %vm702, 1, 0
        %v707 = vsel %vm703, 1, 0
        %v708 = vcvt.s32.f32 %v704
        %v709 = vcvt.s32.f32 %v705
        %v710 = vcvt.s32.f32 %v706
        %v711 = vcvt.s32.f32 %v707
        %v712 = vsub.f32 %v696, 1.0
        %v713 = vsub.f32 %v697, 1.0
        %v714 = vsub.f32 %v698, 1.0
        %v715 = vsub.f32 %v699, 1.0
        %v716 = vsel %vm700, %v712, %v696
        %v717 = vsel %vm701, %v713, %v697
        %v718 = vsel %vm702, %v714, %v698
        %v719 = vsel %vm703, %v715, %v699
        %s720 = scalar_lea.vmem %s239, 160 [#allocation5]
        %721 = vst [vmem:[%s720] sm:$0xff] %v708
        %722 = vst [vmem:[%s720 + $0x8] sm:$0xff] %v709
        %723 = vst [vmem:[%s720 + $0x10] sm:$0xff] %v710
        %724 = vst [vmem:[%s720 + $0x18] sm:$0xff] %v711
        %v725 = vadd.f32 %v688, %v708
        %v726 = vadd.f32 %v689, %v709
        %v727 = vadd.f32 %v690, %v710
        %v728 = vadd.f32 %v691, %v711
        %v729 = vmul.f32 %v716, 0.9
        %v730 = vmul.f32 %v717, 0.9
        %v731 = vmul.f32 %v718, 0.9
        %v732 = vmul.f32 %v719, 0.9
        %v733 = vadd.f32 %v729, %v465
        %v734 = vadd.f32 %v730, %v467
        %v735 = vadd.f32 %v731, %v506
        %v736 = vadd.f32 %v732, %v508
        %vm737 = vcmp.ge.f32.partialorder %v733, 1.0
        %vm738 = vcmp.ge.f32.partialorder %v734, 1.0
        %vm739 = vcmp.ge.f32.partialorder %v735, 1.0
        %vm740 = vcmp.ge.f32.partialorder %v736, 1.0
        %v741 = vsel %vm737, 1, 0
        %v742 = vsel %vm738, 1, 0
        %v743 = vsel %vm739, 1, 0
        %v744 = vsel %vm740, 1, 0
        %v745 = vcvt.s32.f32 %v741
        %v746 = vcvt.s32.f32 %v742
        %v747 = vcvt.s32.f32 %v743
        %v748 = vcvt.s32.f32 %v744
        %v749 = vsub.f32 %v733, 1.0
        %v750 = vsub.f32 %v734, 1.0
        %v751 = vsub.f32 %v735, 1.0
        %v752 = vsub.f32 %v736, 1.0
        %v753 = vsel %vm737, %v749, %v733
        %v754 = vsel %vm738, %v750, %v734
        %v755 = vsel %vm739, %v751, %v735
        %v756 = vsel %vm740, %v752, %v736
        %s757 = scalar_lea.vmem %s239, 192 [#allocation5]
        %758 = vst [vmem:[%s757] sm:$0xff] %v745
        %759 = vst [vmem:[%s757 + $0x8] sm:$0xff] %v746
        %760 = vst [vmem:[%s757 + $0x10] sm:$0xff] %v747
        %761 = vst [vmem:[%s757 + $0x18] sm:$0xff] %v748
        %v762 = vadd.f32 %v725, %v745
        %v763 = vadd.f32 %v726, %v746
        %v764 = vadd.f32 %v727, %v747
        %v765 = vadd.f32 %v728, %v748
        %v766 = vmul.f32 %v753, 0.9
        %v767 = vmul.f32 %v754, 0.9
        %v768 = vmul.f32 %v755, 0.9
        %v769 = vmul.f32 %v756, 0.9
        %v770 = vadd.f32 %v766, %v465
        %v771 = vadd.f32 %v767, %v467
        %v772 = vadd.f32 %v768, %v506
        %v773 = vadd.f32 %v769, %v508
        %vm774 = vcmp.ge.f32.partialorder %v770, 1.0
        %vm775 = vcmp.ge.f32.partialorder %v771, 1.0
        %vm776 = vcmp.ge.f32.partialorder %v772, 1.0
        %vm777 = vcmp.ge.f32.partialorder %v773, 1.0
        %v778 = vsel %vm774, 1, 0
        %v779 = vsel %vm775, 1, 0
        %v780 = vsel %vm776, 1, 0
        %v781 = vsel %vm777, 1, 0
        %v782 = vcvt.s32.f32 %v778
        %v783 = vcvt.s32.f32 %v779
        %v784 = vcvt.s32.f32 %v780
        %v785 = vcvt.s32.f32 %v781
        %s786 = scalar_lea.vmem %s239, 224 [#allocation5]
        %787 = vst [vmem:[%s786] sm:$0xff] %v782
        %788 = vst [vmem:[%s786 + $0x8] sm:$0xff] %v783
        %789 = vst [vmem:[%s786 + $0x10] sm:$0xff] %v784
        %790 = vst [vmem:[%s786 + $0x18] sm:$0xff] %v785
        %v791 = vadd.f32 %v762, %v782
        %v792 = vadd.f32 %v763, %v783
        %v793 = vadd.f32 %v764, %v784
        %v794 = vadd.f32 %v765, %v785
        %v795 = vmul.f32 %v791, 0.125
        %v796 = vmul.f32 %v792, 0.125
        %v797 = vmul.f32 %v793, 0.125
        %v798 = vmul.f32 %v794, 0.125
        %799 = vst [vmem:[%s246] sm:$0xff] %v795
        %800 = vst [vmem:[%s246 + $0x8] sm:$0xff] %v796
        %801 = vst [vmem:[%s246 + $0x10] sm:$0xff] %v797
        %802 = vst [vmem:[%s246 + $0x18] sm:$0xff] %v798
        %s803 = sand.u32 %s117, 1
        %s804 = scalar_lea.sflag [#allocation4], %s803
        %s805 = sand.u32 %s117, 1
        %s806 = smul.addr %s805, 256
        %s807 = scalar_lea.vmem [#allocation5], %s806
        %s808 = sand.u32 %s145, 1
        %s809 = scalar_lea.sflag [#allocation7], %s808
        %s810 = sand.u32 %s145, 1
        %s811 = smul.addr %s810, 32
        %s812 = scalar_lea.vmem [#allocation6], %s811
        // Predicated region
        $region37: #{tpu_custom_call.1} parent=31 // pred_check
          %p813 = pneg %p127
        $region38: #{tpu_custom_call.1} parent=31 // pred_check_branch
          %815 = sbr.rel (%p813) target = $region40
        $region39: #{tpu_custom_call.1} parent=31 // pred_region
          %s816 = smul.u32 4, %s30
          %s818 = ssub.s32 4096, 4096
          %819 = vsyncadd %s804, %s818
          %s820 = smul.addr %s29, 32
          %s821 = sadd.s32 %s816, %s820
          %s822 = smul.addr %s821, 128
          %s823 = scalar_lea.hbm %s3, %s822
          %s824 = sshll.u32 %s807, 4
          %s825 = int_to_ptr.vmem [resolvable:$true] %s824
          %830 = dma.vmem_to_hbm [thread:$0]  %s825, 4096, %s823, %s804, 512, 512, 32
        $region40: #{tpu_custom_call.1} parent=31 // pred_fallthru
          _
        // Predicated region
        $region41: #{tpu_custom_call.1} parent=31 // pred_check
          %p831 = pneg %p155
        $region42: #{tpu_custom_call.1} parent=31 // pred_check_branch
          %833 = sbr.rel (%p831) target = $region44
        $region43: #{tpu_custom_call.1} parent=31 // pred_region
          %s834 = smul.u32 4, %s30
          %s836 = ssub.s32 512, 512
          %837 = vsyncadd %s809, %s836
          %s838 = smul.addr %s29, 4
          %s839 = sadd.s32 %s834, %s838
          %s840 = smul.addr %s839, 128
          %s841 = scalar_lea.hbm %s4, %s840
          %s843 = sshll.u32 %s812, 4
          %s844 = int_to_ptr.vmem [resolvable:$true] %s843
          %846 = dma.vmem_to_hbm [thread:$0]  %s844, 512, %s841, %s809
        $region44: #{tpu_custom_call.1} parent=31 // pred_fallthru
          _
      $region32: #{tpu_custom_call.1} parent=5 // pred_fallthru
        _
      %p847 = scmp.le.s32.totalorder 2, %s20
      // Predicated region
      $region45: #{tpu_custom_call.1} parent=5 // pred_check
        %p848 = pneg %p847
      $region46: #{tpu_custom_call.1} parent=5 // pred_check_branch
        %850 = sbr.rel (%p848) target = $region48
      $region47: #{tpu_custom_call.1} parent=5 // pred_region
        %s851 = ssub.s32 %s20, 2
        // Predicated region
        $region49: #{tpu_custom_call.1} parent=47 // pred_check
          %p852 = pneg %p133
        $region50: #{tpu_custom_call.1} parent=47 // pred_check_branch
          %854 = sbr.rel (%p852) target = $region52
        $region51: #{tpu_custom_call.1} parent=47 // pred_region
          %s855 = sand.u32 %s118, 1
          %s856 = scalar_lea.sflag [#allocation4], %s855
          %s857 = sand.u32 %s118, 1
          %s858 = smul.addr %s857, 256
          %s859 = scalar_lea.vmem [#allocation5], %s858
          %860 = dma.done %s856, 4096
        $region52: #{tpu_custom_call.1} parent=47 // pred_fallthru
          _
        // Predicated region
        $region53: #{tpu_custom_call.1} parent=47 // pred_check
          %p861 = pneg %p161
        $region54: #{tpu_custom_call.1} parent=47 // pred_check_branch
          %863 = sbr.rel (%p861) target = $region56
        $region55: #{tpu_custom_call.1} parent=47 // pred_region
          %s864 = sand.u32 %s146, 1
          %s865 = scalar_lea.sflag [#allocation7], %s864
          %s866 = sand.u32 %s146, 1
          %s867 = smul.addr %s866, 32
          %s868 = scalar_lea.vmem [#allocation6], %s867
          %869 = dma.done %s865, 512
        $region56: #{tpu_custom_call.1} parent=47 // pred_fallthru
          _
      $region48: #{tpu_custom_call.1} parent=5 // pred_fallthru
        _
    $region6: #{tpu_custom_call.1} parent=1 // loop_footer
      %s24 = sadd.s32 1, %s20
    $region7: #{tpu_custom_call.1} parent=1 // loop_footer_branch
      %19 = sbr.rel target = $region3
    $region8: #{tpu_custom_call.1} parent=1 // loop_exit
      _
    %870 = vsyncpa [#allocation3], 1
    %s871 = scalar_lea.sflag [#allocation3], 1
    %872 = vsyncpa %s871, 1
    %873 = vsyncpa [#allocation4], 1
    %s874 = scalar_lea.sflag [#allocation4], 1
    %875 = vsyncpa %s874, 1
    %876 = vsyncpa [#allocation7], 1
    %s877 = scalar_lea.sflag [#allocation7], 1
    %878 = vsyncpa %s877, 1

</llo_original>
